<compile_context>
chip_gen: v7x
topology: tpu7x:2x2x1
jax: 0.10.0
libtpu: 0.0.40
codegen_flags: <defaults>
</compile_context>

<pallas_src>
import functools

import jax
import jax.numpy as jnp
from jax.experimental import pallas as pl
from jax.experimental.pallas import tpu as pltpu


def _make_fused_mlp_kernel(n_layers, nb):
    """Kernel with signature (x_ref, [w_ref, t_ref]*n_layers, o_ref)."""

    def kernel(*refs):
        x_ref = refs[0]                      # (NB, C_in, TC)
        o_ref = refs[-1]                     # (NB, C_last, TC)
        # Load the (tiny) weights / shifts once, reuse across the NB unroll.
        ws = [refs[1 + 2 * i][...] for i in range(n_layers)]   # (C_out_i, C_in_i)
        ts = [refs[2 + 2 * i][...] for i in range(n_layers)]   # (C_out_i, 1)
        for n in range(nb):                  # short static unroll, NB <= 8
            h = x_ref[n].astype(jnp.float32)                 # (C_in, TC)
            for i in range(n_layers):
                # TODO(synk): for the K=4 first layer a 4-step VPU rank-1
                # accumulation would skip MXU push/pop latency; kept on the
                # MXU for simplicity (kernel is HBM-bound).
                y = jnp.dot(ws[i], h, preferred_element_type=jnp.float32)
                h = jnp.maximum(y + ts[i], 0.0)              # folded-BN shift + ReLU
            o_ref[n] = h.astype(o_ref.dtype)

    return kernel


def _round_up(v, m):
    return -(-v // m) * m


def _pick_col_tile(hw, max_tile):
    # Lane-axis tile: full extent when small, otherwise a 128-lane multiple so
    # all but (at most) one tail block store with unmasked full-width vst.
    if hw <= 128:
        return hw
    if hw % 128 == 0 and hw <= max_tile:
        return hw
    return min(max_tile, _round_up(hw, 128))


def _vmem_footprint(nb, tc, c_in, c_last, max_c, act_bytes):
    # Double-buffered input/output blocks + ~2 live f32 intermediates.
    io = 2 * nb * tc * act_bytes * (c_in + c_last)
    interm = 2 * nb * tc * 4 * max_c
    return io + interm


def mlp_forward_fused(x_nchw, params, *, max_col_tile=8192, max_batch_block=8,
                      out_dtype=None):
    N, C, H, W = x_nchw.shape
    hw = H * W
    n_layers = len(params)
    c_last = params[-1]["w"].shape[0]
    max_c = max([C] + [p["w"].shape[0] for p in params])
    out_dtype = x_nchw.dtype if out_dtype is None else out_dtype
    act_bytes = max(jnp.dtype(x_nchw.dtype).itemsize, jnp.dtype(out_dtype).itemsize)

    x3d = x_nchw.reshape(N, C, hw)            # free reshape, native NCHW layout

    # --- tile / batch-block selection -------------------------------------
    tc = _pick_col_tile(hw, max_col_tile)
    nb = min(N, max_batch_block)

    # Keep the double-buffered footprint within a conservative VMEM budget
    # (v7x: 64 MiB physical per TC; v5e/v6e: 128 MiB).
    budget = 40 << 20
    while _vmem_footprint(nb, tc, C, c_last, max_c, act_bytes) > budget and nb > 1:
        nb = (nb + 1) // 2
    while _vmem_footprint(nb, tc, C, c_last, max_c, act_bytes) > budget and tc > 256:
        tc = _round_up(max(128, tc // 2), 128)

    n_col = pl.cdiv(hw, tc)
    n_bat = pl.cdiv(N, nb)
    # v7x has 2 TensorCores: keep >= 2 grid steps when the batch allows it so
    # "parallel" semantics can shard work across both cores.
    if n_col * n_bat < 2 and N > 1:
        nb = (N + 1) // 2
        n_bat = pl.cdiv(N, nb)

    # --- specs --------------------------------------------------------------
    flat_inputs = [x3d]
    in_specs = [pl.BlockSpec((nb, C, tc), lambda b, j: (b, 0, j))]
    for p in params:
        c_out, c_in = p["w"].shape
        flat_inputs += [p["w"], p["t"]]
        in_specs += [
            pl.BlockSpec((c_out, c_in), lambda b, j: (0, 0)),
            pl.BlockSpec((c_out, 1), lambda b, j: (0, 0)),
        ]
    out_spec = pl.BlockSpec((nb, c_last, tc), lambda b, j: (b, 0, j))

    flops = 2 * N * hw * sum(p["w"].shape[0] * p["w"].shape[1] for p in params)
    bytes_accessed = (
        N * hw * (C * jnp.dtype(x3d.dtype).itemsize
                  + c_last * jnp.dtype(out_dtype).itemsize)
        + 4 * sum(p["w"].size + p["t"].size for p in params))

    out = pl.pallas_call(
        _make_fused_mlp_kernel(n_layers, nb),
        out_shape=jax.ShapeDtypeStruct((N, c_last, hw), out_dtype),
        grid=(n_bat, n_col),
        in_specs=in_specs,
        out_specs=out_spec,
        compiler_params=pltpu.CompilerParams(
            dimension_semantics=("parallel", "parallel"),
            # Above the 16 MiB (v5e) / 32 MiB (v6e/v7x) scoped defaults, below
            # v7x's 64 MiB per-TC physical VMEM.
            vmem_limit_bytes=48 * 1024 * 1024),
        cost_estimate=pl.CostEstimate(
            flops=flops, transcendentals=0, bytes_accessed=bytes_accessed),
    )(*flat_inputs)

    return out.reshape(N, c_last, H, W)


mlp_forward = jax.jit(
    mlp_forward_fused,
    static_argnames=("max_col_tile", "max_batch_block", "out_dtype"))


def init_mlp_params(key, in_channels, out_channels):
    """Deterministic parameters matching the PyTorch module, BN pre-folded."""
    channels = [in_channels] + list(out_channels)
    params = []
    eps = 1e-5
    for i in range(1, len(channels)):
        c_in, c_out = channels[i - 1], channels[i]
        key, k_w, k_b, k_m, k_v = jax.random.split(key, 5)
        # Conv2d(c_in, c_out, 1): weight (c_out, c_in, 1, 1) -> (c_out, c_in)
        bound = 1.0 / (c_in ** 0.5)
        w = jax.random.uniform(k_w, (c_out, c_in), jnp.float32, -bound, bound)
        b = jax.random.uniform(k_b, (c_out,), jnp.float32, -bound, bound)
        # BatchNorm2d(c_out): gamma=1, beta=0, deterministic running stats.
        gamma = jnp.ones((c_out,), jnp.float32)
        beta = jnp.zeros((c_out,), jnp.float32)
        running_mean = jax.random.normal(k_m, (c_out,), jnp.float32) * 0.1
        running_var = jax.random.uniform(k_v, (c_out,), jnp.float32, 0.5, 1.5)
        # Fold conv bias + eval-mode BN:
        #   y = gamma*(Wx + b - mean)/sqrt(var+eps) + beta = W' x + t
        s = gamma / jnp.sqrt(running_var + eps)
        t = s * (b - running_mean) + beta
        params.append({
            "w": w * s[:, None],          # (c_out, c_in), BN scale folded in
            "t": t.reshape(c_out, 1),     # (c_out, 1), lane-broadcast shift
        })
    return params


def mlp_reference(x_nchw, params):
    """Pure-JAX reference using the same folded parameters."""
    N, C, H, W = x_nchw.shape
    h = x_nchw.reshape(N, C, H * W).astype(jnp.float32)
    for p in params:
        h = jnp.maximum(jnp.einsum("oc,ncm->nom", p["w"], h) + p["t"][None], 0.0)
    return h.reshape(N, -1, H, W)


if __name__ == "__main__":
    key = jax.random.PRNGKey(0)
    k_x, k_p = jax.random.split(key)

    # MLP(in_channels=4, out_channels=[32, 16]), NCHW input.
    in_channels = 4
    out_channels = [32, 16]
    N, H, W = 2, 16, 16

    x = jax.random.normal(k_x, (N, in_channels, H, W), jnp.float32)
    params = init_mlp_params(k_p, in_channels, out_channels)

    # f32 activations in HBM (exact match to the PyTorch module's dtype).
    out_f32 = mlp_forward(x, params)
    jax.block_until_ready(out_f32)
    assert out_f32.shape == (N, out_channels[-1], H, W), out_f32.shape
    ref_f32 = mlp_reference(x, params)
    err = float(jnp.max(jnp.abs(out_f32 - ref_f32)))
    assert jnp.allclose(out_f32, ref_f32, atol=5e-2, rtol=5e-2), err

    # bf16 activations in HBM (halves activation HBM traffic; f32 accumulate
    # inside the kernel).  Compared against the f32 reference on the same
    # bf16-quantized input.
    x_bf16 = x.astype(jnp.bfloat16)
    out_bf16 = mlp_forward(x_bf16, params)
    jax.block_until_ready(out_bf16)
    assert out_bf16.dtype == jnp.bfloat16
    ref_bf = mlp_reference(x_bf16.astype(jnp.float32), params)
    err_bf = float(jnp.max(jnp.abs(out_bf16.astype(jnp.float32) - ref_bf)))
    assert jnp.allclose(out_bf16.astype(jnp.float32), ref_bf,
                        atol=6e-2, rtol=6e-2), err_bf

    print("KERNEL_OK")
</pallas_src>

<mosaic_0001>
module attributes {stable_mosaic.version = 11 : i64} {
  func.func @kernel(%arg0: i32, %arg1: i32, %arg2: memref<1x4x256xf32, #tpu.memory_space<vmem>>, %arg3: memref<32x4xf32, #tpu.memory_space<vmem>>, %arg4: memref<32x1xf32, #tpu.memory_space<vmem>>, %arg5: memref<16x32xf32, #tpu.memory_space<vmem>>, %arg6: memref<16x1xf32, #tpu.memory_space<vmem>>, %arg7: memref<1x16x256xf32, #tpu.memory_space<vmem>>) attributes {dimension_semantics = [#tpu.dimension_semantics<parallel>, #tpu.dimension_semantics<parallel>], iteration_bounds = array<i64: 2, 1>, scalar_prefetch = 0 : i64, scratch_operands = 0 : i64, tpu.core_type = #tpu.core_type<tc>, window_params = [{transform_indices = @transform_0, window_bounds = array<i64: 1, 4, 256>}, {pipeline_mode = #tpu.pipeline_mode<synchronous>, transform_indices = @transform_1, window_bounds = array<i64: 32, 4>}, {pipeline_mode = #tpu.pipeline_mode<synchronous>, transform_indices = @transform_2, window_bounds = array<i64: 32, 1>}, {pipeline_mode = #tpu.pipeline_mode<synchronous>, transform_indices = @transform_3, window_bounds = array<i64: 16, 32>}, {pipeline_mode = #tpu.pipeline_mode<synchronous>, transform_indices = @transform_4, window_bounds = array<i64: 16, 1>}, {transform_indices = @transform_5, window_bounds = array<i64: 1, 16, 256>}]} {
    %c0 = arith.constant 0 : index
    %c0_0 = arith.constant 0 : index
    %0 = vector.load %arg3[%c0, %c0_0] : memref<32x4xf32, #tpu.memory_space<vmem>>, vector<32x4xf32>
    %c0_1 = arith.constant 0 : index
    %c0_2 = arith.constant 0 : index
    %1 = vector.load %arg5[%c0_1, %c0_2] : memref<16x32xf32, #tpu.memory_space<vmem>>, vector<16x32xf32>
    %c0_3 = arith.constant 0 : index
    %c0_4 = arith.constant 0 : index
    %2 = vector.load %arg4[%c0_3, %c0_4] : memref<32x1xf32, #tpu.memory_space<vmem>>, vector<32x1xf32>
    %c0_5 = arith.constant 0 : index
    %c0_6 = arith.constant 0 : index
    %3 = vector.load %arg6[%c0_5, %c0_6] : memref<16x1xf32, #tpu.memory_space<vmem>>, vector<16x1xf32>
    %c0_7 = arith.constant 0 : index
    %c0_8 = arith.constant 0 : index
    %c0_9 = arith.constant 0 : index
    %4 = vector.load %arg2[%c0_7, %c0_8, %c0_9] : memref<1x4x256xf32, #tpu.memory_space<vmem>>, vector<1x4x256xf32>
    %5 = vector.shape_cast %4 : vector<1x4x256xf32> to vector<4x256xf32>
    %cst = arith.constant dense<0.000000e+00> : vector<32x256xf32>
    %6 = tpu.matmul %0, %5, %cst {dimension_numbers = #tpu.dot_dimension_numbers<[1], [0], [0], [1], [0, 0, 1, 1], [], []>} : vector<32x4xf32>, vector<4x256xf32>, vector<32x256xf32> -> vector<32x256xf32>
    %7 = vector.broadcast %2 : vector<32x1xf32> to vector<32x256xf32>
    %8 = arith.addf %6, %7 : vector<32x256xf32>
    %cst_10 = arith.constant 0.000000e+00 : f32
    %9 = vector.broadcast %cst_10 : f32 to vector<32x256xf32>
    %10 = arith.maximumf %8, %9 : vector<32x256xf32>
    %cst_11 = arith.constant dense<0.000000e+00> : vector<16x256xf32>
    %11 = tpu.matmul %1, %10, %cst_11 {dimension_numbers = #tpu.dot_dimension_numbers<[1], [0], [0], [1], [0, 0, 1, 1], [], []>} : vector<16x32xf32>, vector<32x256xf32>, vector<16x256xf32> -> vector<16x256xf32>
    %12 = vector.broadcast %3 : vector<16x1xf32> to vector<16x256xf32>
    %13 = arith.addf %11, %12 : vector<16x256xf32>
    %cst_12 = arith.constant 0.000000e+00 : f32
    %14 = vector.broadcast %cst_12 : f32 to vector<16x256xf32>
    %15 = arith.maximumf %13, %14 : vector<16x256xf32>
    %c0_13 = arith.constant 0 : index
    %c0_14 = arith.constant 0 : index
    %c0_15 = arith.constant 0 : index
    %16 = vector.load %arg7[%c0_13, %c0_14, %c0_15] : memref<1x16x256xf32, #tpu.memory_space<vmem>>, vector<1x16x256xf32>
    %17 = vector.shape_cast %16 : vector<1x16x256xf32> to vector<16x256xf32>
    %18 = vector.shape_cast %15 : vector<16x256xf32> to vector<1x16x256xf32>
    tpu.vector_store %arg7[%c0_13, %c0_14, %c0_15], %18 {strides = array<i32>} : memref<1x16x256xf32, #tpu.memory_space<vmem>>, vector<1x16x256xf32>,
    return
  }
  func.func @transform_0(%arg0: i32, %arg1: i32) -> (i32, i32, i32) {
    %c0_i32 = arith.constant 0 : i32
    %c0_i32_0 = arith.constant 0 : i32
    return %arg0, %c0_i32, %arg1 : i32, i32, i32
  }
  func.func @transform_1(%arg0: i32, %arg1: i32) -> (i32, i32) {
    %c0_i32 = arith.constant 0 : i32
    %c0_i32_0 = arith.constant 0 : i32
    %c0_i32_1 = arith.constant 0 : i32
    return %c0_i32, %c0_i32_0 : i32, i32
  }
  func.func @transform_2(%arg0: i32, %arg1: i32) -> (i32, i32) {
    %c0_i32 = arith.constant 0 : i32
    %c0_i32_0 = arith.constant 0 : i32
    %c0_i32_1 = arith.constant 0 : i32
    return %c0_i32, %c0_i32_0 : i32, i32
  }
  func.func @transform_3(%arg0: i32, %arg1: i32) -> (i32, i32) {
    %c0_i32 = arith.constant 0 : i32
    %c0_i32_0 = arith.constant 0 : i32
    %c0_i32_1 = arith.constant 0 : i32
    return %c0_i32, %c0_i32_0 : i32, i32
  }
  func.func @transform_4(%arg0: i32, %arg1: i32) -> (i32, i32) {
    %c0_i32 = arith.constant 0 : i32
    %c0_i32_0 = arith.constant 0 : i32
    %c0_i32_1 = arith.constant 0 : i32
    return %c0_i32, %c0_i32_0 : i32, i32
  }
  func.func @transform_5(%arg0: i32, %arg1: i32) -> (i32, i32, i32) {
    %c0_i32 = arith.constant 0 : i32
    %c0_i32_0 = arith.constant 0 : i32
    return %arg0, %c0_i32, %arg1 : i32, i32, i32
  }
}

</mosaic_0001>

<llo_original>
// kernel: mlp_forward_fused.1
$region0: #{mlp_forward_fused.1}
  #allocation0 [shape = 'u32[]', space=smem, size = 0x4, offset = 0x4, fixed_abs, tag = 'smem constant byte address 0x4 - core index']
  #allocation1 [shape = 'u32[144,128]{1,0:T(1,128)}', space=vmem, size = 0x12000, scoped, tag = 'internal scratch']
  %s0 = inlined_call_operand.vmem [shape: f32[2,4,256], index: 0, kind: input, shape index: {}]
  %s1 = inlined_call_operand.vmem [shape: f32[32,4], index: 1, kind: input, shape index: {}]
  %s2 = inlined_call_operand.vmem [shape: f32[32,1], index: 2, kind: input, shape index: {}]
  %s3 = inlined_call_operand.vmem [shape: f32[16,32], index: 3, kind: input, shape index: {}]
  %s4 = inlined_call_operand.vmem [shape: f32[16,1], index: 4, kind: input, shape index: {}]
  %s5 = inlined_call_operand.vmem [shape: f32[2,16,256], index: 5, kind: output, shape index: {}]
  %s6 = sld [smem:[#allocation0]]
  $region53: #{mlp_forward_fused.1} parent=0
    _
  %s8 = ssub.s32 1, %s6
  %s9 = scalar_select 0, %s8, %s6
  loop: start=0, step=1, limit=4
  $region2: #{mlp_forward_fused.1} parent=0 // loop_pre_header
    _
  $region3: #{mlp_forward_fused.1} parent=0 // loop_header
    %s11 = sphi 0, %s15
    %p12 = scmp.ge.s32.totalorder %s11, 4
    %s18 = sphi 0, %s30
    %s19 = sphi 0, %s26
    %s20 = sphi 0, %s18
    %s21 = sphi 0, %s19
    %s22 = sphi 0, %s20
    %s23 = sphi 0, %s21
    %s35 = sphi 0, %s37
    %s38 = sphi 0, %s35
    %s39 = sphi 0, %s38
    %s55 = sphi 0, %s39
    %s59 = sphi 0, %s59
    %s61 = sphi 0, %s59
    %s62 = sphi 0, %s61
    %s76 = sphi 0, %s62
    %s80 = sphi 0, %s80
    %s82 = sphi 0, %s80
    %s83 = sphi 0, %s82
    %s97 = sphi 0, %s83
    %s101 = sphi 0, %s101
    %s103 = sphi 0, %s101
    %s104 = sphi 0, %s103
    %s118 = sphi 0, %s104
    %s122 = sphi 0, %s122
    %s124 = sphi 0, %s122
    %s125 = sphi 0, %s124
    %s139 = sphi 0, %s125
    %s147 = sphi 0, %s149
    %s150 = sphi 0, %s147
    %s151 = sphi 0, %s150
    %s167 = sphi 0, %s151
  $region4: #{mlp_forward_fused.1} parent=0 // loop_header_branch
    %14 = sbr.rel (%p12) target = $region8
  $region5: #{mlp_forward_fused.1} parent=0 // loop_body
    %s16 = ssub.s32 %s11, 1
    %s17 = ssub.s32 %s11, 2
    %s24 = sadd.s32 1, %s19
    %p25 = scmp.ge.s32.totalorder %s24, 1
    %s26 = scalar_select %p25, 0, %s24
    %s27 = sadd.s32 1, %s18
    %s28 = scalar_select %p25, %s27, %s18
    %p29 = scmp.ge.s32.totalorder %s28, 2
    %s30 = scalar_select %p29, 0, %s28
    %s31 = ssub.s32 %s18, %s30
    %s32 = ssub.s32 %s19, %s26
    %s33 = sor.u32 %s31, %s32
    %p34 = scmp.eq.s32.totalorder %s33, 0
    %s36 = sadd.s32 %s35, 1
    %s37 = scalar_select %p34, %s35, %s36
    %p40 = pneg %p34
    %p41 = scmp.eq.s32.totalorder %s11, 1
    %p42 = por %p40, %p41
    %p43 = scmp.ne.s32.totalorder %s35, %s38
    %p44 = scmp.eq.s32.totalorder %s11, 0
    %p45 = por %p43, %p44
    %p46 = scmp.ne.s32.totalorder %s35, %s38
    %p47 = scmp.eq.s32.totalorder %s16, 1
    %p48 = por %p46, %p47
    %p49 = scmp.ne.s32.totalorder %s38, %s39
    %p50 = scmp.eq.s32.totalorder %s16, 0
    %p51 = por %p49, %p50
    %p52 = scmp.ne.s32.totalorder %s38, %s39
    %p53 = scmp.eq.s32.totalorder %s17, 1
    %p54 = por %p52, %p53
    %p56 = scmp.ne.s32.totalorder %s39, %s55
    %p57 = scmp.eq.s32.totalorder %s17, 0
    %p58 = por %p56, %p57
    %s60 = sadd.s32 %s59, 1
    %p63 = scmp.eq.s32.totalorder %s11, 1
    %p64 = scmp.ne.s32.totalorder %s59, %s61
    %p65 = scmp.eq.s32.totalorder %s11, 0
    %p66 = por %p64, %p65
    %p67 = scmp.ne.s32.totalorder %s59, %s61
    %p68 = scmp.eq.s32.totalorder %s16, 1
    %p69 = por %p67, %p68
    %p70 = scmp.ne.s32.totalorder %s61, %s62
    %p71 = scmp.eq.s32.totalorder %s16, 0
    %p72 = por %p70, %p71
    %p73 = scmp.ne.s32.totalorder %s61, %s62
    %p74 = scmp.eq.s32.totalorder %s17, 1
    %p75 = por %p73, %p74
    %p77 = scmp.ne.s32.totalorder %s62, %s76
    %p78 = scmp.eq.s32.totalorder %s17, 0
    %p79 = por %p77, %p78
    %s81 = sadd.s32 %s80, 1
    %p84 = scmp.eq.s32.totalorder %s11, 1
    %p85 = scmp.ne.s32.totalorder %s80, %s82
    %p86 = scmp.eq.s32.totalorder %s11, 0
    %p87 = por %p85, %p86
    %p88 = scmp.ne.s32.totalorder %s80, %s82
    %p89 = scmp.eq.s32.totalorder %s16, 1
    %p90 = por %p88, %p89
    %p91 = scmp.ne.s32.totalorder %s82, %s83
    %p92 = scmp.eq.s32.totalorder %s16, 0
    %p93 = por %p91, %p92
    %p94 = scmp.ne.s32.totalorder %s82, %s83
    %p95 = scmp.eq.s32.totalorder %s17, 1
    %p96 = por %p94, %p95
    %p98 = scmp.ne.s32.totalorder %s83, %s97
    %p99 = scmp.eq.s32.totalorder %s17, 0
    %p100 = por %p98, %p99
    %s102 = sadd.s32 %s101, 1
    %p105 = scmp.eq.s32.totalorder %s11, 1
    %p106 = scmp.ne.s32.totalorder %s101, %s103
    %p107 = scmp.eq.s32.totalorder %s11, 0
    %p108 = por %p106, %p107
    %p109 = scmp.ne.s32.totalorder %s101, %s103
    %p110 = scmp.eq.s32.totalorder %s16, 1
    %p111 = por %p109, %p110
    %p112 = scmp.ne.s32.totalorder %s103, %s104
    %p113 = scmp.eq.s32.totalorder %s16, 0
    %p114 = por %p112, %p113
    %p115 = scmp.ne.s32.totalorder %s103, %s104
    %p116 = scmp.eq.s32.totalorder %s17, 1
    %p117 = por %p115, %p116
    %p119 = scmp.ne.s32.totalorder %s104, %s118
    %p120 = scmp.eq.s32.totalorder %s17, 0
    %p121 = por %p119, %p120
    %s123 = sadd.s32 %s122, 1
    %p126 = scmp.eq.s32.totalorder %s11, 1
    %p127 = scmp.ne.s32.totalorder %s122, %s124
    %p128 = scmp.eq.s32.totalorder %s11, 0
    %p129 = por %p127, %p128
    %p130 = scmp.ne.s32.totalorder %s122, %s124
    %p131 = scmp.eq.s32.totalorder %s16, 1
    %p132 = por %p130, %p131
    %p133 = scmp.ne.s32.totalorder %s124, %s125
    %p134 = scmp.eq.s32.totalorder %s16, 0
    %p135 = por %p133, %p134
    %p136 = scmp.ne.s32.totalorder %s124, %s125
    %p137 = scmp.eq.s32.totalorder %s17, 1
    %p138 = por %p136, %p137
    %p140 = scmp.ne.s32.totalorder %s125, %s139
    %p141 = scmp.eq.s32.totalorder %s17, 0
    %p142 = por %p140, %p141
    %s143 = ssub.s32 %s18, %s30
    %s144 = ssub.s32 %s19, %s26
    %s145 = sor.u32 %s143, %s144
    %p146 = scmp.eq.s32.totalorder %s145, 0
    %s148 = sadd.s32 %s147, 1
    %s149 = scalar_select %p146, %s147, %s148
    %p152 = pneg %p146
    %p153 = scmp.eq.s32.totalorder %s11, 1
    %p154 = por %p152, %p153
    %p155 = scmp.ne.s32.totalorder %s147, %s150
    %p156 = scmp.eq.s32.totalorder %s11, 0
    %p157 = por %p155, %p156
    %p158 = scmp.ne.s32.totalorder %s147, %s150
    %p159 = scmp.eq.s32.totalorder %s16, 1
    %p160 = por %p158, %p159
    %p161 = scmp.ne.s32.totalorder %s150, %s151
    %p162 = scmp.eq.s32.totalorder %s16, 0
    %p163 = por %p161, %p162
    %p164 = scmp.ne.s32.totalorder %s150, %s151
    %p165 = scmp.eq.s32.totalorder %s17, 1
    %p166 = por %p164, %p165
    %p168 = scmp.ne.s32.totalorder %s151, %s167
    %p169 = scmp.eq.s32.totalorder %s17, 0
    %p170 = por %p168, %p169
    %p171 = scmp.le.s32.totalorder 1, %s11
    %p172 = scmp.lt.s32.totalorder %s11, 3
    %p173 = pnand %p171, %p172
    %p174 = pneg %p173
    // Predicated region
    $region9: #{mlp_forward_fused.1} parent=5 // pred_check
      _
    $region10: #{mlp_forward_fused.1} parent=5 // pred_check_branch
      %176 = sbr.rel (%p173) target = $region12
    $region11: #{mlp_forward_fused.1} parent=5 // pred_region
      %s177 = ssub.s32 %s11, 1
      // Predicated region
      $region13: #{mlp_forward_fused.1} parent=11 // pred_check
        %p178 = pneg %p72
      $region14: #{mlp_forward_fused.1} parent=11 // pred_check_branch
        %180 = sbr.rel (%p178) target = $region16
      $region15: #{mlp_forward_fused.1} parent=11 // pred_region
        _
      $region16: #{mlp_forward_fused.1} parent=11 // pred_fallthru
        _
      // Predicated region
      $region17: #{mlp_forward_fused.1} parent=11 // pred_check
        %p181 = pneg %p93
      $region18: #{mlp_forward_fused.1} parent=11 // pred_check_branch
        %183 = sbr.rel (%p181) target = $region20
      $region19: #{mlp_forward_fused.1} parent=11 // pred_region
        _
      $region20: #{mlp_forward_fused.1} parent=11 // pred_fallthru
        _
      // Predicated region
      $region21: #{mlp_forward_fused.1} parent=11 // pred_check
        %p184 = pneg %p114
      $region22: #{mlp_forward_fused.1} parent=11 // pred_check_branch
        %186 = sbr.rel (%p184) target = $region24
      $region23: #{mlp_forward_fused.1} parent=11 // pred_region
        _
      $region24: #{mlp_forward_fused.1} parent=11 // pred_fallthru
        _
      // Predicated region
      $region25: #{mlp_forward_fused.1} parent=11 // pred_check
        %p187 = pneg %p135
      $region26: #{mlp_forward_fused.1} parent=11 // pred_check_branch
        %189 = sbr.rel (%p187) target = $region28
      $region27: #{mlp_forward_fused.1} parent=11 // pred_region
        _
      $region28: #{mlp_forward_fused.1} parent=11 // pred_fallthru
        _
    $region12: #{mlp_forward_fused.1} parent=5 // pred_fallthru
      _
    %p190 = scmp.lt.s32.totalorder %s11, 2
    // Predicated region
    $region29: #{mlp_forward_fused.1} parent=5 // pred_check
      %p191 = pneg %p190
    $region30: #{mlp_forward_fused.1} parent=5 // pred_check_branch
      %193 = sbr.rel (%p191) target = $region32
    $region31: #{mlp_forward_fused.1} parent=5 // pred_region
      // Predicated region
      $region33: #{mlp_forward_fused.1} parent=31 // pred_check
        %p194 = pneg %p45
      $region34: #{mlp_forward_fused.1} parent=31 // pred_check_branch
        %196 = sbr.rel (%p194) target = $region36
      $region35: #{mlp_forward_fused.1} parent=31 // pred_region
        %s197 = smul.u32 2, %s19
        %p198 = scmp.lt.s32.totalorder %s18, 1
        %s199 = scalar_select %p198, %s18, 1
        %p200 = scmp.lt.s32.totalorder %s197, 1
        %s201 = scalar_select %p200, %s197, 1
        %s202 = smul.addr %s199, 2
        %s203 = sadd.s32 %s201, %s202
        %s204 = smul.addr %s203, 4
        %s205 = scalar_lea.vmem %s0, %s204
        %s206 = smul.u32 2, %s19
      $region36: #{mlp_forward_fused.1} parent=31 // pred_fallthru
        _
    $region32: #{mlp_forward_fused.1} parent=5 // pred_fallthru
      _
    %p207 = scmp.le.s32.totalorder 1, %s11
    %p208 = scmp.lt.s32.totalorder %s11, 3
    %p209 = pnand %p207, %p208
    %p210 = pneg %p209
    // Predicated region
    $region37: #{mlp_forward_fused.1} parent=5 // pred_check
      _
    $region38: #{mlp_forward_fused.1} parent=5 // pred_check_branch
      %212 = sbr.rel (%p209) target = $region40
    $region39: #{mlp_forward_fused.1} parent=5 // pred_region
      %s213 = ssub.s32 %s11, 1
      %s214 = smul.u32 2, %s21
      %p215 = scmp.lt.s32.totalorder %s20, 1
      %s216 = scalar_select %p215, %s20, 1
      %p217 = scmp.lt.s32.totalorder %s214, 1
      %s218 = scalar_select %p217, %s214, 1
      %s219 = smul.addr %s216, 2
      %s220 = sadd.s32 %s218, %s219
      %s221 = smul.addr %s220, 4
      %s222 = scalar_lea.vmem %s0, %s221
      %p223 = pneg %p51
      %p224 = pneg %p48
      %p225 = pneg %p72
      %p226 = pneg %p69
      %p227 = pneg %p93
      %p228 = pneg %p90
      %p229 = pneg %p114
      %p230 = pneg %p111
      %p231 = pneg %p135
      %p232 = pneg %p132
      %p233 = pneg %p163
      %p234 = pneg %p160
      %s235 = smul.u32 2, %s21
      %p236 = scmp.lt.s32.totalorder %s20, 1
      %s237 = scalar_select %p236, %s20, 1
      %p238 = scmp.lt.s32.totalorder %s235, 1
      %s239 = scalar_select %p238, %s235, 1
      %s240 = smul.addr %s237, 4
      %s241 = sadd.s32 %s239, %s240
      %s242 = smul.addr %s241, 8
      %s243 = scalar_lea.vmem %s5, %s242
      %s244 = smul.u32 2, %s21
      %p245 = scmp.lt.s32.totalorder %s20, 1
      %s246 = scalar_select %p245, %s20, 1
      %p247 = scmp.lt.s32.totalorder %s244, 1
      %s248 = scalar_select %p247, %s244, 1
      %s249 = smul.addr %s246, 2
      %s250 = sadd.s32 %s248, %s249
      %s251 = smul.addr %s250, 4
      %s252 = scalar_lea.vmem %s0, %s251
      %s253 = smul.u32 2, %s21
      %s254 = smul.u32 2, %s21
      %p255 = scmp.lt.s32.totalorder %s20, 1
      %s256 = scalar_select %p255, %s20, 1
      %p257 = scmp.lt.s32.totalorder %s254, 1
      %s258 = scalar_select %p257, %s254, 1
      %s259 = smul.addr %s256, 4
      %s260 = sadd.s32 %s258, %s259
      %s261 = smul.addr %s260, 8
      %s262 = scalar_lea.vmem %s5, %s261
      %s263 = smul.u32 2, %s21
      %v264 = vld [vmem:[%s1] sm:$0xff]
      %v265 = vld [vmem:[%s1 + $0x8] sm:$0xff]
      %v266 = vld [vmem:[%s1 + $0x10] sm:$0xff]
      %v267 = vld [vmem:[%s1 + $0x18] sm:$0xff]
      %v268 = vld [vmem:[%s3] sm:$0xff]
      %v269 = vld [vmem:[%s3 + $0x8] sm:$0xff]
      %v270 = vld [vmem:[%s2] sm:$0xff]
      %v271 = vld [vmem:[%s2 + $0x8] sm:$0xff]
      %v272 = vld [vmem:[%s2 + $0x10] sm:$0xff]
      %v273 = vld [vmem:[%s2 + $0x18] sm:$0xff]
      %v274 = vld [vmem:[%s4] sm:$0xff]
      %v275 = vld [vmem:[%s4 + $0x8] sm:$0xff]
      %v276 = vld [vmem:[%s252] sm:$0xff]
      %278 = vset.pattern.permute.xlu0 0
      %279 = vperm.xlu0 %278, %v270
      %v280 = vpop.permute.xlu0 %279
      %283 = vset.pattern.permute.xlu0 0
      %284 = vperm.xlu0 %283, %v271
      %v285 = vpop.permute.xlu0 %284
      %288 = vset.pattern.permute.xlu0 0
      %289 = vperm.xlu0 %288, %v272
      %v290 = vpop.permute.xlu0 %289
      %293 = vset.pattern.permute.xlu0 0
      %294 = vperm.xlu0 %293, %v273
      %v295 = vpop.permute.xlu0 %294
      %v298 = vcombine.high %v276, %v276
      %vm299 = vcmask 31744
      %v301 = vsel %vm299, %v264, 0
      %v304 = vsel %vm299, %v265, 0
      %v307 = vsel %vm299, %v266, 0
      %v310 = vsel %vm299, %v267, 0
      %vm312 = vcmask 1043456
      %v313 = vsel %vm312, %v276, 0
      %v315 = vsel %vm312, %v298, 0
      %317 = vmatprep.subr.mxu0 %v315
      %318 = vmatpush1.msra.mxu0 %v313
      %319 = vmatprep.subr.mxu0 0.0
      %320 = vmatpush1.msra.mxu0 0.0
      %321 = vmatprep.subr.mxu0 0.0
      %322 = vmatpush1.msra.mxu0 0.0
      %323 = vmatprep.subr.mxu0 0.0
      %324 = vmatpush1.msra.mxu0 0.0
      %325 = vmatprep.subr.mxu0 0.0
      %326 = vmatpush1.msra.mxu0 0.0
      %327 = vmatprep.subr.mxu0 0.0
      %328 = vmatpush1.msra.mxu0 0.0
      %329 = vmatprep.subr.mxu0 0.0
      %330 = vmatpush1.msra.mxu0 0.0
      %331 = vmatprep.subr.mxu0 0.0
      %332 = vmatpush1.msra.mxu0 0.0
      %333 = vmatprep.subr.mxu0 0.0
      %334 = vmatpush1.msra.mxu0 0.0
      %335 = vmatprep.subr.mxu0 0.0
      %336 = vmatpush1.msra.mxu0 0.0
      %337 = vmatprep.subr.mxu0 0.0
      %338 = vmatpush1.msra.mxu0 0.0
      %339 = vmatprep.subr.mxu0 0.0
      %340 = vmatpush1.msra.mxu0 0.0
      %341 = vmatprep.subr.mxu0 0.0
      %342 = vmatpush1.msra.mxu0 0.0
      %343 = vmatprep.subr.mxu0 0.0
      %344 = vmatpush1.msra.mxu0 0.0
      %345 = vmatprep.subr.mxu0 0.0
      %346 = vmatpush1.msra.mxu0 0.0
      %347 = vmatprep.subr.mxu0 0.0
      %348 = vmatpush1.msra.mxu0 0.0
      %349 = vmatprep.subr.mxu0 0.0
      %350 = vmatpush1.msra.mxu0 0.0
      %351 = vmatprep.subr.mxu0 0.0
      %352 = vmatpush1.msra.mxu0 0.0
      %353 = vmatprep.subr.mxu0 0.0
      %354 = vmatpush1.msra.mxu0 0.0
      %355 = vmatprep.subr.mxu0 0.0
      %356 = vmatpush1.msra.mxu0 0.0
      %357 = vmatprep.subr.mxu0 0.0
      %358 = vmatpush1.msra.mxu0 0.0
      %359 = vmatprep.subr.mxu0 0.0
      %360 = vmatpush1.msra.mxu0 0.0
      %361 = vmatprep.subr.mxu0 0.0
      %362 = vmatpush1.msra.mxu0 0.0
      %363 = vmatprep.subr.mxu0 0.0
      %364 = vmatpush1.msra.mxu0 0.0
      %365 = vmatprep.subr.mxu0 0.0
      %366 = vmatpush1.msra.mxu0 0.0
      %367 = vmatprep.subr.mxu0 0.0
      %368 = vmatpush1.msra.mxu0 0.0
      %369 = vmatprep.subr.mxu0 0.0
      %370 = vmatpush1.msra.mxu0 0.0
      %371 = vmatprep.subr.mxu0 0.0
      %372 = vmatpush1.msra.mxu0 0.0
      %373 = vmatprep.subr.mxu0 0.0
      %374 = vmatpush1.msra.mxu0 0.0
      %375 = vmatprep.subr.mxu0 0.0
      %376 = vmatpush1.msra.mxu0 0.0
      %377 = vmatprep.subr.mxu0 0.0
      %378 = vmatpush1.msra.mxu0 0.0
      %379 = vmatprep.subr.mxu0 0.0
      %380 = vmatpush1.msra.mxu0 0.0
      %381 = vmatprep.mubr.f32.mxu0 0.0
      %382 = vmatmul.mubr.f32.gmra.mrb[0].mxu0 %v301
      %v383 = vpop.f32.mrb[0].mxu0
      %v384 = vadd.f32 %v280, %v383
      %v385 = vpop.f32.mrb[0].mxu0
      %v386 = vadd.f32 %v280, %v385
      %387 = vmatprep.mubr.f32.mxu0 0.0
      %388 = vmatmul.mubr.f32.gmra.mrb[0].mxu0 %v304
      %v389 = vpop.f32.mrb[0].mxu0
      %v390 = vadd.f32 %v285, %v389
      %v391 = vpop.f32.mrb[0].mxu0
      %v392 = vadd.f32 %v285, %v391
      %393 = vmatprep.mubr.f32.mxu0 0.0
      %394 = vmatmul.mubr.f32.gmra.mrb[0].mxu0 %v307
      %v395 = vpop.f32.mrb[0].mxu0
      %v396 = vadd.f32 %v290, %v395
      %v397 = vpop.f32.mrb[0].mxu0
      %v398 = vadd.f32 %v290, %v397
      %399 = vmatprep.mubr.f32.mxu0 0.0
      %400 = vmatmul.mubr.f32.gmra.mrb[0].mxu0 %v310
      %v401 = vpop.f32.mrb[0].mxu0
      %v402 = vadd.f32 %v295, %v401
      %v403 = vpop.f32.mrb[0].mxu0
      %v404 = vadd.f32 %v295, %v403
      %405 = vdwg.mxu0
      %v406 = vmax.f32 %v384, 0.0
      %v407 = vmax.f32 %v386, 0.0
      %v408 = vmax.f32 %v390, 0.0
      %v409 = vmax.f32 %v392, 0.0
      %v410 = vmax.f32 %v396, 0.0
      %v411 = vmax.f32 %v398, 0.0
      %v412 = vmax.f32 %v402, 0.0
      %v413 = vmax.f32 %v404, 0.0
      %415 = vset.pattern.permute.xlu0 0
      %416 = vperm.xlu0 %415, %v274
      %v417 = vpop.permute.xlu0 %416
      %420 = vset.pattern.permute.xlu0 0
      %421 = vperm.xlu0 %420, %v275
      %v422 = vpop.permute.xlu0 %421
      %vm424 = vcmask 261120
      %v426 = vsel %vm424, %v268, 0
      %v429 = vsel %vm424, %v269, 0
      %431 = vmatprep.subr.mxu0 %v407
      %432 = vmatpush1.msra.mxu0 %v406
      %433 = vmatprep.subr.mxu0 %v409
      %434 = vmatpush1.msra.mxu0 %v408
      %435 = vmatprep.subr.mxu0 %v411
      %436 = vmatpush1.msra.mxu0 %v410
      %437 = vmatprep.subr.mxu0 %v413
      %438 = vmatpush1.msra.mxu0 %v412
      %439 = vmatprep.subr.mxu0 0.0
      %440 = vmatpush1.msra.mxu0 0.0
      %441 = vmatprep.subr.mxu0 0.0
      %442 = vmatpush1.msra.mxu0 0.0
      %443 = vmatprep.subr.mxu0 0.0
      %444 = vmatpush1.msra.mxu0 0.0
      %445 = vmatprep.subr.mxu0 0.0
      %446 = vmatpush1.msra.mxu0 0.0
      %447 = vmatprep.subr.mxu0 0.0
      %448 = vmatpush1.msra.mxu0 0.0
      %449 = vmatprep.subr.mxu0 0.0
      %450 = vmatpush1.msra.mxu0 0.0
      %451 = vmatprep.subr.mxu0 0.0
      %452 = vmatpush1.msra.mxu0 0.0
      %453 = vmatprep.subr.mxu0 0.0
      %454 = vmatpush1.msra.mxu0 0.0
      %455 = vmatprep.subr.mxu0 0.0
      %456 = vmatpush1.msra.mxu0 0.0
      %457 = vmatprep.subr.mxu0 0.0
      %458 = vmatpush1.msra.mxu0 0.0
      %459 = vmatprep.subr.mxu0 0.0
      %460 = vmatpush1.msra.mxu0 0.0
      %461 = vmatprep.subr.mxu0 0.0
      %462 = vmatpush1.msra.mxu0 0.0
      %463 = vmatprep.subr.mxu0 0.0
      %464 = vmatpush1.msra.mxu0 0.0
      %465 = vmatprep.subr.mxu0 0.0
      %466 = vmatpush1.msra.mxu0 0.0
      %467 = vmatprep.subr.mxu0 0.0
      %468 = vmatpush1.msra.mxu0 0.0
      %469 = vmatprep.subr.mxu0 0.0
      %470 = vmatpush1.msra.mxu0 0.0
      %471 = vmatprep.subr.mxu0 0.0
      %472 = vmatpush1.msra.mxu0 0.0
      %473 = vmatprep.subr.mxu0 0.0
      %474 = vmatpush1.msra.mxu0 0.0
      %475 = vmatprep.subr.mxu0 0.0
      %476 = vmatpush1.msra.mxu0 0.0
      %477 = vmatprep.subr.mxu0 0.0
      %478 = vmatpush1.msra.mxu0 0.0
      %479 = vmatprep.subr.mxu0 0.0
      %480 = vmatpush1.msra.mxu0 0.0
      %481 = vmatprep.subr.mxu0 0.0
      %482 = vmatpush1.msra.mxu0 0.0
      %483 = vmatprep.subr.mxu0 0.0
      %484 = vmatpush1.msra.mxu0 0.0
      %485 = vmatprep.subr.mxu0 0.0
      %486 = vmatpush1.msra.mxu0 0.0
      %487 = vmatprep.subr.mxu0 0.0
      %488 = vmatpush1.msra.mxu0 0.0
      %489 = vmatprep.subr.mxu0 0.0
      %490 = vmatpush1.msra.mxu0 0.0
      %491 = vmatprep.subr.mxu0 0.0
      %492 = vmatpush1.msra.mxu0 0.0
      %493 = vmatprep.subr.mxu0 0.0
      %494 = vmatpush1.msra.mxu0 0.0
      %495 = vmatprep.mubr.f32.mxu0 0.0
      %496 = vmatmul.mubr.f32.gmra.mrb[0].mxu0 %v426
      %v497 = vpop.f32.mrb[0].mxu0
      %v498 = vadd.f32 %v417, %v497
      %v499 = vpop.f32.mrb[0].mxu0
      %v500 = vadd.f32 %v417, %v499
      %501 = vmatprep.mubr.f32.mxu0 0.0
      %502 = vmatmul.mubr.f32.gmra.mrb[0].mxu0 %v429
      %v503 = vpop.f32.mrb[0].mxu0
      %v504 = vadd.f32 %v422, %v503
      %v505 = vpop.f32.mrb[0].mxu0
      %v506 = vadd.f32 %v422, %v505
      %507 = vdwg.mxu0
      %v508 = vmax.f32 %v498, 0.0
      %v509 = vmax.f32 %v500, 0.0
      %v510 = vmax.f32 %v504, 0.0
      %v511 = vmax.f32 %v506, 0.0
      %512 = vst [vmem:[%s262] sm:$0xff] %v508
      %513 = vst [vmem:[%s262 + $0x8] sm:$0xff] %v509
      %514 = vst [vmem:[%s262 + $0x10] sm:$0xff] %v510
      %515 = vst [vmem:[%s262 + $0x18] sm:$0xff] %v511
      %s516 = smul.u32 2, %s21
      %p517 = scmp.lt.s32.totalorder %s20, 1
      %s518 = scalar_select %p517, %s20, 1
      %p519 = scmp.lt.s32.totalorder %s516, 1
      %s520 = scalar_select %p519, %s516, 1
      %s521 = smul.addr %s518, 4
      %s522 = sadd.s32 %s520, %s521
      %s523 = smul.addr %s522, 8
      %s524 = scalar_lea.vmem %s5, %s523
      // Predicated region
      $region41: #{mlp_forward_fused.1} parent=39 // pred_check
        %p525 = pneg %p160
      $region42: #{mlp_forward_fused.1} parent=39 // pred_check_branch
        %527 = sbr.rel (%p525) target = $region44
      $region43: #{mlp_forward_fused.1} parent=39 // pred_region
        %s528 = smul.u32 2, %s21
      $region44: #{mlp_forward_fused.1} parent=39 // pred_fallthru
        _
    $region40: #{mlp_forward_fused.1} parent=5 // pred_fallthru
      _
    %p529 = scmp.le.s32.totalorder 2, %s11
    // Predicated region
    $region45: #{mlp_forward_fused.1} parent=5 // pred_check
      %p530 = pneg %p529
    $region46: #{mlp_forward_fused.1} parent=5 // pred_check_branch
      %532 = sbr.rel (%p530) target = $region48
    $region47: #{mlp_forward_fused.1} parent=5 // pred_region
      %s533 = ssub.s32 %s11, 2
      // Predicated region
      $region49: #{mlp_forward_fused.1} parent=47 // pred_check
        %p534 = pneg %p166
      $region50: #{mlp_forward_fused.1} parent=47 // pred_check_branch
        %536 = sbr.rel (%p534) target = $region52
      $region51: #{mlp_forward_fused.1} parent=47 // pred_region
        %s537 = smul.u32 2, %s23
        %p538 = scmp.lt.s32.totalorder %s22, 1
        %s539 = scalar_select %p538, %s22, 1
        %p540 = scmp.lt.s32.totalorder %s537, 1
        %s541 = scalar_select %p540, %s537, 1
        %s542 = smul.addr %s539, 4
        %s543 = sadd.s32 %s541, %s542
        %s544 = smul.addr %s543, 8
        %s545 = scalar_lea.vmem %s5, %s544
      $region52: #{mlp_forward_fused.1} parent=47 // pred_fallthru
        _
    $region48: #{mlp_forward_fused.1} parent=5 // pred_fallthru
      _
  $region6: #{mlp_forward_fused.1} parent=0 // loop_footer
    %s15 = sadd.s32 1, %s11
  $region7: #{mlp_forward_fused.1} parent=0 // loop_footer_branch
    %10 = sbr.rel target = $region3
  $region8: #{mlp_forward_fused.1} parent=0 // loop_exit
    _

</llo_original>
